<compile_context>
chip_gen: v5e
topology: v5e:2x2
jax: 0.10.0
libtpu: 0.0.40
codegen_flags: <defaults>
</compile_context>

<pallas_src>
import math

import jax
import jax.numpy as jnp
from jax.experimental import pallas as pl
from jax.experimental.pallas import tpu as pltpu

EPS = 1e-6
_LANES = 512          # lane-dense tile width (multiple of 128)
_TILE_ROWS = 256      # sublane rows per tile -> 256*512*4 B = 512 KiB per f32 stream


def _round_up(x, m):
    return -(-x // m) * m


def _db_loss_kernel(binary_ref, thresh_ref, tbin_ref, gt_ref, mask_ref,
                    tmap_ref, tmask_ref,
                    neg_loss_ref, acc_ref):
    """Processes one (tr, LANES) tile of every map and accumulates the
    8 masked reductions into a lane-partial (8, LANES) slab."""
    b = pl.program_id(1)                       # reduction ("arbitrary") axis

    @pl.when(b == 0)
    def _():                                   # fresh accumulator per parallel slice
        acc_ref[...] = jnp.zeros_like(acc_ref)

    # upcast AFTER the DMA — inputs may arrive as bf16 to halve HBM traffic
    binary = binary_ref[0].astype(jnp.float32)
    gt = gt_ref[0].astype(jnp.float32)
    mask = mask_ref[0].astype(jnp.float32)
    tmask = tmask_ref[0].astype(jnp.float32)

    positive = gt * mask                       # also the dice "gm" term
    negative = mask - positive                 # == (1 - gt) * mask

    # BCE on probabilities; log clamped at -100 like torch binary_cross_entropy
    log_p = jnp.maximum(jnp.log(binary), -100.0)
    log_1mp = jnp.maximum(jnp.log(1.0 - binary), -100.0)
    bce = -(gt * log_p + (1.0 - gt) * log_1mp)

    pos_loss = bce * positive
    neg_loss = bce * negative
    neg_loss_ref[0] = neg_loss                 # full map for wrapper-side OHEM top-k

    # masked L1 on the threshold map
    l1 = jnp.abs(thresh_ref[0].astype(jnp.float32)
                 - tmap_ref[0].astype(jnp.float32)) * tmask

    # dice terms on the approximate binary map
    tbin = tbin_ref[0].astype(jnp.float32)
    inter = tbin * positive                    # tbin * gt * mask
    pm = tbin * mask

    updates = (positive,     # 0: pos count  (== dice "gm" sum)
               negative,     # 1: neg count
               pos_loss,     # 2
               neg_loss,     # 3 (diagnostic / total negative loss)
               l1,           # 4
               tmask,        # 5
               inter,        # 6
               pm)           # 7
    for q, val in enumerate(updates):          # 8 small lane-partial accumulates
        acc_ref[0, q:q + 1, :] = acc_ref[0, q:q + 1, :] + jnp.sum(
            val, axis=0, keepdims=True)


def db_loss_pallas(pre_batch, gt_batch, l1_scale=10.0, bce_scale=5.0,
                   negative_ratio=3.0, tile_rows=_TILE_ROWS):
    binary = pre_batch['binary']
    thresh = pre_batch['thresh']
    tbin = pre_batch['thresh_binary']
    gt = gt_batch['gt']
    mask = gt_batch['mask']
    tmap = gt_batch['thresh_map']
    tmask = gt_batch['thresh_mask']

    total = math.prod(binary.shape)
    rows = -(-total // _LANES)

    # Grid geometry: outer "parallel" slice axis (2 for the v7x megacore path),
    # inner "arbitrary" reduction axis over row tiles.  tr is chosen to divide
    # the per-slice row count exactly when possible so no padding copy is made.
    P = 2 if rows >= 16 else 1
    per = _round_up(rows, 8 * P) // P          # rows per slice, multiple of 8
    cap = max(8, min(tile_rows, per) - (min(tile_rows, per) % 8))
    tr = next((c for c in range(cap, 7, -8) if per % c == 0), None)
    if tr is None:                             # no exact divisor -> pad up
        tr = cap
        per = _round_up(per, tr)
    rows_p = per * P
    B = per // tr
    padded = rows_p * _LANES

    def prep(x, pad_value):
        # keep the native dtype — the kernel upcasts after the DMA
        x = x.reshape(-1)
        if padded != total:
            x = jnp.concatenate(
                [x, jnp.full((padded - total,), pad_value, x.dtype)])
        return x.reshape(P, per, _LANES)

    # pad values chosen so padded pixels contribute exactly 0 to every sum
    ins = [prep(binary, 0.5), prep(thresh, 0.0), prep(tbin, 0.0),
           prep(gt, 0.0), prep(mask, 0.0), prep(tmap, 0.0), prep(tmask, 0.0)]

    tile_spec = pl.BlockSpec((1, tr, _LANES), lambda p, b: (p, b, 0))
    acc_spec = pl.BlockSpec((1, 8, _LANES), lambda p, b: (p, 0, 0))

    neg_map, partials = pl.pallas_call(
        _db_loss_kernel,
        out_shape=(jax.ShapeDtypeStruct((P, per, _LANES), jnp.float32),
                   jax.ShapeDtypeStruct((P, 8, _LANES), jnp.float32)),
        grid=(P, B),
        in_specs=[tile_spec] * 7,
        out_specs=(tile_spec, acc_spec),
        compiler_params=pltpu.CompilerParams(
            dimension_semantics=("parallel", "arbitrary"),
            vmem_limit_bytes=32 * 1024 * 1024),
    )(*ins)

    sums = jnp.sum(partials, axis=(0, 2))          # tiny final (8,) reduction
    pos_cnt, neg_cnt, pos_loss_sum = sums[0], sums[1], sums[2]
    l1_sum, tmask_sum, inter_sum, pm_sum = sums[4], sums[5], sums[6], sums[7]
    gm_sum = pos_cnt                                # gm == gt*mask == positive

    # OHEM hard-negative selection (torch.topk with data-dependent k).
    # TODO(synk): an in-kernel histogram threshold would drop the full-map
    # writeback + sort, but is approximate at the tie bin; exact top-k semantics
    # are kept here in plain JAX.
    neg_k = jnp.minimum(neg_cnt, jnp.floor(pos_cnt * negative_ratio))
    flat = neg_map.reshape(-1)
    if padded != total:
        flat = flat[:total]
    neg_sorted = jnp.sort(flat)[::-1]
    take = jnp.arange(neg_sorted.shape[0], dtype=jnp.float32) < neg_k
    neg_topk_sum = jnp.sum(jnp.where(take, neg_sorted, 0.0))

    bce_loss = (pos_loss_sum + neg_topk_sum) / (pos_cnt + neg_k + EPS)
    l1_loss = jnp.where(tmask_sum == 0.0, 0.0, l1_sum / tmask_sum)
    dice_loss = 1.0 - 2.0 * inter_sum / (pm_sum + gm_sum + EPS)

    total_loss = dice_loss + l1_scale * l1_loss + bce_scale * bce_loss
    metrics = dict(loss_bce=bce_loss, loss_l1=l1_loss, loss_thresh=dice_loss)
    return total_loss, metrics


def db_loss_reference(pre_batch, gt_batch, l1_scale=10.0, bce_scale=5.0,
                      negative_ratio=3.0):
    """Plain-JAX mirror of the PyTorch DBLoss, for correctness checking."""
    binary = pre_batch['binary'].astype(jnp.float32)
    thresh = pre_batch['thresh'].astype(jnp.float32)
    tbin = pre_batch['thresh_binary'].astype(jnp.float32)
    gt = gt_batch['gt'].astype(jnp.float32)
    mask = gt_batch['mask'].astype(jnp.float32)
    tmap = gt_batch['thresh_map'].astype(jnp.float32)
    tmask = gt_batch['thresh_mask'].astype(jnp.float32)

    positive = gt * mask
    negative = (1.0 - gt) * mask
    log_p = jnp.maximum(jnp.log(binary), -100.0)
    log_1mp = jnp.maximum(jnp.log(1.0 - binary), -100.0)
    bce = -(gt * log_p + (1.0 - gt) * log_1mp)
    pos_cnt = positive.sum()
    neg_k = jnp.minimum(negative.sum(), jnp.floor(pos_cnt * negative_ratio))
    neg_sorted = jnp.sort((bce * negative).reshape(-1))[::-1]
    take = jnp.arange(neg_sorted.shape[0], dtype=jnp.float32) < neg_k
    bce_loss = ((bce * positive).sum() + jnp.sum(jnp.where(take, neg_sorted, 0.0))) \
        / (pos_cnt + neg_k + EPS)

    tms = tmask.sum()
    l1_loss = jnp.where(tms == 0.0, 0.0, (jnp.abs(thresh - tmap) * tmask).sum() / tms)
    dice_loss = 1.0 - 2.0 * (tbin * gt * mask).sum() / \
        ((tbin * mask).sum() + (gt * mask).sum() + EPS)
    return dice_loss + l1_scale * l1_loss + bce_scale * bce_loss


class DetLoss:
    """Config-driven dispatcher mirroring ptocr DetLoss (only the 'DB' path)."""

    def __init__(self, config):
        self.algorithm = config['base']['algorithm']
        if self.algorithm == 'DB':
            self.l1_scale = float(config['loss']['l1_scale'])
            self.bce_scale = float(config['loss']['bce_scale'])
        else:
            raise AssertionError('not support this algorithm !!!')

    def forward(self, pre_batch, gt_batch):
        return db_loss_pallas(pre_batch, gt_batch,
                              l1_scale=self.l1_scale, bce_scale=self.bce_scale)

    __call__ = forward


if __name__ == "__main__":
    config = {'base': {'algorithm': 'DB'},
              'loss': {'function': 'DBLoss', 'l1_scale': 10, 'bce_scale': 5}}
    det_loss = DetLoss(config)

    def make_batch(key, N, H, W):
        k1, k2, k3, k4, k5, k6, k7 = jax.random.split(key, 7)
        pre_batch = {
            'binary': jax.nn.sigmoid(jax.random.normal(k1, (N, H, W), jnp.float32)),
            'thresh': jax.nn.sigmoid(jax.random.normal(k2, (N, H, W), jnp.float32)),
            'thresh_binary': jax.nn.sigmoid(jax.random.normal(k3, (N, H, W), jnp.float32)),
        }
        gt_batch = {
            'gt': (jax.random.uniform(k4, (N, H, W)) > 0.5).astype(jnp.float32),
            'mask': (jax.random.uniform(k5, (N, H, W)) > 0.1).astype(jnp.float32),
            'thresh_map': 0.3 + 0.4 * jax.random.uniform(k6, (N, H, W), jnp.float32),
            'thresh_mask': (jax.random.uniform(k7, (N, H, W)) > 0.5).astype(jnp.float32),
        }
        return pre_batch, gt_batch

    key = jax.random.PRNGKey(0)
    ka, kb, kc = jax.random.split(key, 3)
    # (a) single small tile + padding, (b) 2-way parallel slices, exact-divisor
    #     tiles (no padding copy), (c) 2-way parallel slices + padding tail.
    for (N, H, W), k in (((2, 16, 16), ka), ((2, 128, 128), kb), ((2, 100, 100), kc)):
        pre_batch, gt_batch = make_batch(k, N, H, W)
        loss, metrics = det_loss(pre_batch, gt_batch)
        loss = jax.block_until_ready(loss)
        ref = jax.block_until_ready(
            db_loss_reference(pre_batch, gt_batch, l1_scale=10.0, bce_scale=5.0))
        assert abs(float(loss) - float(ref)) < 1e-3, (N, H, W, float(loss), float(ref))

    # exercise the multi-step "arbitrary" accumulation axis explicitly
    pre_batch, gt_batch = make_batch(kb, 2, 128, 128)
    loss_small_tiles, _ = db_loss_pallas(pre_batch, gt_batch, tile_rows=8)
    loss_small_tiles = jax.block_until_ready(loss_small_tiles)
    ref = jax.block_until_ready(db_loss_reference(pre_batch, gt_batch))
    assert abs(float(loss_small_tiles) - float(ref)) < 1e-3

    print("KERNEL_OK")
</pallas_src>

<mosaic_0001>
module attributes {stable_mosaic.version = 11 : i64} {
  func.func @_db_loss_kernel(%arg0: i32, %arg1: i32, %arg2: memref<1x8x512xf32, #tpu.memory_space<vmem>>, %arg3: memref<1x8x512xf32, #tpu.memory_space<vmem>>, %arg4: memref<1x8x512xf32, #tpu.memory_space<vmem>>, %arg5: memref<1x8x512xf32, #tpu.memory_space<vmem>>, %arg6: memref<1x8x512xf32, #tpu.memory_space<vmem>>, %arg7: memref<1x8x512xf32, #tpu.memory_space<vmem>>, %arg8: memref<1x8x512xf32, #tpu.memory_space<vmem>>, %arg9: memref<1x8x512xf32, #tpu.memory_space<vmem>>, %arg10: memref<1x8x512xf32, #tpu.memory_space<vmem>>) attributes {dimension_semantics = [#tpu.dimension_semantics<parallel>, #tpu.dimension_semantics<arbitrary>], iteration_bounds = array<i64: 1, 1>, scalar_prefetch = 0 : i64, scratch_operands = 0 : i64, tpu.core_type = #tpu.core_type<tc>, window_params = [{transform_indices = @transform_0, window_bounds = array<i64: 1, 8, 512>}, {transform_indices = @transform_1, window_bounds = array<i64: 1, 8, 512>}, {transform_indices = @transform_2, window_bounds = array<i64: 1, 8, 512>}, {transform_indices = @transform_3, window_bounds = array<i64: 1, 8, 512>}, {transform_indices = @transform_4, window_bounds = array<i64: 1, 8, 512>}, {transform_indices = @transform_5, window_bounds = array<i64: 1, 8, 512>}, {transform_indices = @transform_6, window_bounds = array<i64: 1, 8, 512>}, {transform_indices = @transform_7, window_bounds = array<i64: 1, 8, 512>}, {transform_indices = @transform_8, window_bounds = array<i64: 1, 8, 512>}]} {
    %c0_i32 = arith.constant 0 : i32
    %0 = arith.cmpi eq, %arg1, %c0_i32 : i32
    %1 = arith.extui %0 : i1 to i32
    %c0_i32_0 = arith.constant 0 : i32
    %2 = arith.cmpi ne, %1, %c0_i32_0 : i32
    scf.if %2 {
      %cst_77 = arith.constant 0.000000e+00 : f32
      %108 = vector.broadcast %cst_77 : f32 to vector<1x8x512xf32>
      %c0_78 = arith.constant 0 : index
      %c0_79 = arith.constant 0 : index
      %c0_80 = arith.constant 0 : index
      %109 = vector.load %arg10[%c0_78, %c0_79, %c0_80] : memref<1x8x512xf32, #tpu.memory_space<vmem>>, vector<1x8x512xf32>
      tpu.vector_store %arg10[%c0_78, %c0_79, %c0_80], %108 {strides = array<i32>} : memref<1x8x512xf32, #tpu.memory_space<vmem>>, vector<1x8x512xf32>,
    } else {
    }
    %c0 = arith.constant 0 : index
    %c0_1 = arith.constant 0 : index
    %c0_2 = arith.constant 0 : index
    %3 = vector.load %arg2[%c0, %c0_1, %c0_2] : memref<1x8x512xf32, #tpu.memory_space<vmem>>, vector<1x8x512xf32>
    %4 = vector.shape_cast %3 : vector<1x8x512xf32> to vector<8x512xf32>
    %c0_3 = arith.constant 0 : index
    %c0_4 = arith.constant 0 : index
    %c0_5 = arith.constant 0 : index
    %5 = vector.load %arg5[%c0_3, %c0_4, %c0_5] : memref<1x8x512xf32, #tpu.memory_space<vmem>>, vector<1x8x512xf32>
    %6 = vector.shape_cast %5 : vector<1x8x512xf32> to vector<8x512xf32>
    %c0_6 = arith.constant 0 : index
    %c0_7 = arith.constant 0 : index
    %c0_8 = arith.constant 0 : index
    %7 = vector.load %arg6[%c0_6, %c0_7, %c0_8] : memref<1x8x512xf32, #tpu.memory_space<vmem>>, vector<1x8x512xf32>
    %8 = vector.shape_cast %7 : vector<1x8x512xf32> to vector<8x512xf32>
    %c0_9 = arith.constant 0 : index
    %c0_10 = arith.constant 0 : index
    %c0_11 = arith.constant 0 : index
    %9 = vector.load %arg8[%c0_9, %c0_10, %c0_11] : memref<1x8x512xf32, #tpu.memory_space<vmem>>, vector<1x8x512xf32>
    %10 = vector.shape_cast %9 : vector<1x8x512xf32> to vector<8x512xf32>
    %11 = arith.mulf %6, %8 : vector<8x512xf32>
    %12 = arith.subf %8, %11 : vector<8x512xf32>
    %13 = math.log %4 : vector<8x512xf32>
    %cst = arith.constant -1.000000e+02 : f32
    %14 = vector.broadcast %cst : f32 to vector<8x512xf32>
    %15 = arith.maximumf %13, %14 : vector<8x512xf32>
    %cst_12 = arith.constant 1.000000e+00 : f32
    %16 = vector.broadcast %cst_12 : f32 to vector<8x512xf32>
    %17 = arith.subf %16, %4 : vector<8x512xf32>
    %18 = math.log %17 : vector<8x512xf32>
    %cst_13 = arith.constant -1.000000e+02 : f32
    %19 = vector.broadcast %cst_13 : f32 to vector<8x512xf32>
    %20 = arith.maximumf %18, %19 : vector<8x512xf32>
    %21 = arith.mulf %6, %15 : vector<8x512xf32>
    %cst_14 = arith.constant 1.000000e+00 : f32
    %22 = vector.broadcast %cst_14 : f32 to vector<8x512xf32>
    %23 = arith.subf %22, %6 : vector<8x512xf32>
    %24 = arith.mulf %23, %20 : vector<8x512xf32>
    %25 = arith.addf %21, %24 : vector<8x512xf32>
    %cst_15 = arith.constant 0.000000e+00 : f32
    %26 = vector.broadcast %cst_15 : f32 to vector<8x512xf32>
    %27 = arith.subf %26, %25 : vector<8x512xf32>
    %28 = arith.mulf %27, %11 : vector<8x512xf32>
    %29 = arith.mulf %27, %12 : vector<8x512xf32>
    %c0_16 = arith.constant 0 : index
    %c0_17 = arith.constant 0 : index
    %c0_18 = arith.constant 0 : index
    %30 = vector.load %arg9[%c0_16, %c0_17, %c0_18] : memref<1x8x512xf32, #tpu.memory_space<vmem>>, vector<1x8x512xf32>
    %31 = vector.shape_cast %30 : vector<1x8x512xf32> to vector<8x512xf32>
    %32 = vector.shape_cast %29 : vector<8x512xf32> to vector<1x8x512xf32>
    tpu.vector_store %arg9[%c0_16, %c0_17, %c0_18], %32 {strides = array<i32>} : memref<1x8x512xf32, #tpu.memory_space<vmem>>, vector<1x8x512xf32>,
    %c0_19 = arith.constant 0 : index
    %c0_20 = arith.constant 0 : index
    %c0_21 = arith.constant 0 : index
    %33 = vector.load %arg3[%c0_19, %c0_20, %c0_21] : memref<1x8x512xf32, #tpu.memory_space<vmem>>, vector<1x8x512xf32>
    %34 = vector.shape_cast %33 : vector<1x8x512xf32> to vector<8x512xf32>
    %c0_22 = arith.constant 0 : index
    %c0_23 = arith.constant 0 : index
    %c0_24 = arith.constant 0 : index
    %35 = vector.load %arg7[%c0_22, %c0_23, %c0_24] : memref<1x8x512xf32, #tpu.memory_space<vmem>>, vector<1x8x512xf32>
    %36 = vector.shape_cast %35 : vector<1x8x512xf32> to vector<8x512xf32>
    %37 = arith.subf %34, %36 : vector<8x512xf32>
    %38 = math.absf %37 : vector<8x512xf32>
    %39 = arith.mulf %38, %10 : vector<8x512xf32>
    %c0_25 = arith.constant 0 : index
    %c0_26 = arith.constant 0 : index
    %c0_27 = arith.constant 0 : index
    %40 = vector.load %arg4[%c0_25, %c0_26, %c0_27] : memref<1x8x512xf32, #tpu.memory_space<vmem>>, vector<1x8x512xf32>
    %41 = vector.shape_cast %40 : vector<1x8x512xf32> to vector<8x512xf32>
    %42 = arith.mulf %41, %11 : vector<8x512xf32>
    %43 = arith.mulf %41, %8 : vector<8x512xf32>
    %c0_28 = arith.constant 0 : index
    %c0_29 = arith.constant 0 : index
    %c0_30 = arith.constant 0 : index
    %44 = vector.load %arg10[%c0_28, %c0_29, %c0_30] : memref<1x8x512xf32, #tpu.memory_space<vmem>>, vector<1x1x512xf32>
    %45 = vector.shape_cast %44 : vector<1x1x512xf32> to vector<1x512xf32>
    %cst_31 = arith.constant dense<0.000000e+00> : vector<512xf32>
    %46 = vector.multi_reduction <add>, %11, %cst_31 [0] : vector<8x512xf32> to vector<512xf32>
    %47 = vector.shape_cast %46 : vector<512xf32> to vector<1x512xf32>
    %48 = arith.addf %45, %47 : vector<1x512xf32>
    %c0_32 = arith.constant 0 : index
    %c0_33 = arith.constant 0 : index
    %c0_34 = arith.constant 0 : index
    %49 = vector.load %arg10[%c0_32, %c0_33, %c0_34] : memref<1x8x512xf32, #tpu.memory_space<vmem>>, vector<1x1x512xf32>
    %50 = vector.shape_cast %49 : vector<1x1x512xf32> to vector<1x512xf32>
    %51 = vector.shape_cast %48 : vector<1x512xf32> to vector<1x1x512xf32>
    tpu.vector_store %arg10[%c0_32, %c0_33, %c0_34], %51 {strides = array<i32>} : memref<1x8x512xf32, #tpu.memory_space<vmem>>, vector<1x1x512xf32>,
    %c0_35 = arith.constant 0 : index
    %c1 = arith.constant 1 : index
    %c0_36 = arith.constant 0 : index
    %52 = vector.load %arg10[%c0_35, %c1, %c0_36] : memref<1x8x512xf32, #tpu.memory_space<vmem>>, vector<1x1x512xf32>
    %53 = vector.shape_cast %52 : vector<1x1x512xf32> to vector<1x512xf32>
    %cst_37 = arith.constant dense<0.000000e+00> : vector<512xf32>
    %54 = vector.multi_reduction <add>, %12, %cst_37 [0] : vector<8x512xf32> to vector<512xf32>
    %55 = vector.shape_cast %54 : vector<512xf32> to vector<1x512xf32>
    %56 = arith.addf %53, %55 : vector<1x512xf32>
    %c0_38 = arith.constant 0 : index
    %c1_39 = arith.constant 1 : index
    %c0_40 = arith.constant 0 : index
    %57 = vector.load %arg10[%c0_38, %c1_39, %c0_40] : memref<1x8x512xf32, #tpu.memory_space<vmem>>, vector<1x1x512xf32>
    %58 = vector.shape_cast %57 : vector<1x1x512xf32> to vector<1x512xf32>
    %59 = vector.shape_cast %56 : vector<1x512xf32> to vector<1x1x512xf32>
    tpu.vector_store %arg10[%c0_38, %c1_39, %c0_40], %59 {strides = array<i32>} : memref<1x8x512xf32, #tpu.memory_space<vmem>>, vector<1x1x512xf32>,
    %c0_41 = arith.constant 0 : index
    %c2 = arith.constant 2 : index
    %c0_42 = arith.constant 0 : index
    %60 = vector.load %arg10[%c0_41, %c2, %c0_42] : memref<1x8x512xf32, #tpu.memory_space<vmem>>, vector<1x1x512xf32>
    %61 = vector.shape_cast %60 : vector<1x1x512xf32> to vector<1x512xf32>
    %cst_43 = arith.constant dense<0.000000e+00> : vector<512xf32>
    %62 = vector.multi_reduction <add>, %28, %cst_43 [0] : vector<8x512xf32> to vector<512xf32>
    %63 = vector.shape_cast %62 : vector<512xf32> to vector<1x512xf32>
    %64 = arith.addf %61, %63 : vector<1x512xf32>
    %c0_44 = arith.constant 0 : index
    %c2_45 = arith.constant 2 : index
    %c0_46 = arith.constant 0 : index
    %65 = vector.load %arg10[%c0_44, %c2_45, %c0_46] : memref<1x8x512xf32, #tpu.memory_space<vmem>>, vector<1x1x512xf32>
    %66 = vector.shape_cast %65 : vector<1x1x512xf32> to vector<1x512xf32>
    %67 = vector.shape_cast %64 : vector<1x512xf32> to vector<1x1x512xf32>
    tpu.vector_store %arg10[%c0_44, %c2_45, %c0_46], %67 {strides = array<i32>} : memref<1x8x512xf32, #tpu.memory_space<vmem>>, vector<1x1x512xf32>,
    %c0_47 = arith.constant 0 : index
    %c3 = arith.constant 3 : index
    %c0_48 = arith.constant 0 : index
    %68 = vector.load %arg10[%c0_47, %c3, %c0_48] : memref<1x8x512xf32, #tpu.memory_space<vmem>>, vector<1x1x512xf32>
    %69 = vector.shape_cast %68 : vector<1x1x512xf32> to vector<1x512xf32>
    %cst_49 = arith.constant dense<0.000000e+00> : vector<512xf32>
    %70 = vector.multi_reduction <add>, %29, %cst_49 [0] : vector<8x512xf32> to vector<512xf32>
    %71 = vector.shape_cast %70 : vector<512xf32> to vector<1x512xf32>
    %72 = arith.addf %69, %71 : vector<1x512xf32>
    %c0_50 = arith.constant 0 : index
    %c3_51 = arith.constant 3 : index
    %c0_52 = arith.constant 0 : index
    %73 = vector.load %arg10[%c0_50, %c3_51, %c0_52] : memref<1x8x512xf32, #tpu.memory_space<vmem>>, vector<1x1x512xf32>
    %74 = vector.shape_cast %73 : vector<1x1x512xf32> to vector<1x512xf32>
    %75 = vector.shape_cast %72 : vector<1x512xf32> to vector<1x1x512xf32>
    tpu.vector_store %arg10[%c0_50, %c3_51, %c0_52], %75 {strides = array<i32>} : memref<1x8x512xf32, #tpu.memory_space<vmem>>, vector<1x1x512xf32>,
    %c0_53 = arith.constant 0 : index
    %c4 = arith.constant 4 : index
    %c0_54 = arith.constant 0 : index
    %76 = vector.load %arg10[%c0_53, %c4, %c0_54] : memref<1x8x512xf32, #tpu.memory_space<vmem>>, vector<1x1x512xf32>
    %77 = vector.shape_cast %76 : vector<1x1x512xf32> to vector<1x512xf32>
    %cst_55 = arith.constant dense<0.000000e+00> : vector<512xf32>
    %78 = vector.multi_reduction <add>, %39, %cst_55 [0] : vector<8x512xf32> to vector<512xf32>
    %79 = vector.shape_cast %78 : vector<512xf32> to vector<1x512xf32>
    %80 = arith.addf %77, %79 : vector<1x512xf32>
    %c0_56 = arith.constant 0 : index
    %c4_57 = arith.constant 4 : index
    %c0_58 = arith.constant 0 : index
    %81 = vector.load %arg10[%c0_56, %c4_57, %c0_58] : memref<1x8x512xf32, #tpu.memory_space<vmem>>, vector<1x1x512xf32>
    %82 = vector.shape_cast %81 : vector<1x1x512xf32> to vector<1x512xf32>
    %83 = vector.shape_cast %80 : vector<1x512xf32> to vector<1x1x512xf32>
    tpu.vector_store %arg10[%c0_56, %c4_57, %c0_58], %83 {strides = array<i32>} : memref<1x8x512xf32, #tpu.memory_space<vmem>>, vector<1x1x512xf32>,
    %c0_59 = arith.constant 0 : index
    %c5 = arith.constant 5 : index
    %c0_60 = arith.constant 0 : index
    %84 = vector.load %arg10[%c0_59, %c5, %c0_60] : memref<1x8x512xf32, #tpu.memory_space<vmem>>, vector<1x1x512xf32>
    %85 = vector.shape_cast %84 : vector<1x1x512xf32> to vector<1x512xf32>
    %cst_61 = arith.constant dense<0.000000e+00> : vector<512xf32>
    %86 = vector.multi_reduction <add>, %10, %cst_61 [0] : vector<8x512xf32> to vector<512xf32>
    %87 = vector.shape_cast %86 : vector<512xf32> to vector<1x512xf32>
    %88 = arith.addf %85, %87 : vector<1x512xf32>
    %c0_62 = arith.constant 0 : index
    %c5_63 = arith.constant 5 : index
    %c0_64 = arith.constant 0 : index
    %89 = vector.load %arg10[%c0_62, %c5_63, %c0_64] : memref<1x8x512xf32, #tpu.memory_space<vmem>>, vector<1x1x512xf32>
    %90 = vector.shape_cast %89 : vector<1x1x512xf32> to vector<1x512xf32>
    %91 = vector.shape_cast %88 : vector<1x512xf32> to vector<1x1x512xf32>
    tpu.vector_store %arg10[%c0_62, %c5_63, %c0_64], %91 {strides = array<i32>} : memref<1x8x512xf32, #tpu.memory_space<vmem>>, vector<1x1x512xf32>,
    %c0_65 = arith.constant 0 : index
    %c6 = arith.constant 6 : index
    %c0_66 = arith.constant 0 : index
    %92 = vector.load %arg10[%c0_65, %c6, %c0_66] : memref<1x8x512xf32, #tpu.memory_space<vmem>>, vector<1x1x512xf32>
    %93 = vector.shape_cast %92 : vector<1x1x512xf32> to vector<1x512xf32>
    %cst_67 = arith.constant dense<0.000000e+00> : vector<512xf32>
    %94 = vector.multi_reduction <add>, %42, %cst_67 [0] : vector<8x512xf32> to vector<512xf32>
    %95 = vector.shape_cast %94 : vector<512xf32> to vector<1x512xf32>
    %96 = arith.addf %93, %95 : vector<1x512xf32>
    %c0_68 = arith.constant 0 : index
    %c6_69 = arith.constant 6 : index
    %c0_70 = arith.constant 0 : index
    %97 = vector.load %arg10[%c0_68, %c6_69, %c0_70] : memref<1x8x512xf32, #tpu.memory_space<vmem>>, vector<1x1x512xf32>
    %98 = vector.shape_cast %97 : vector<1x1x512xf32> to vector<1x512xf32>
    %99 = vector.shape_cast %96 : vector<1x512xf32> to vector<1x1x512xf32>
    tpu.vector_store %arg10[%c0_68, %c6_69, %c0_70], %99 {strides = array<i32>} : memref<1x8x512xf32, #tpu.memory_space<vmem>>, vector<1x1x512xf32>,
    %c0_71 = arith.constant 0 : index
    %c7 = arith.constant 7 : index
    %c0_72 = arith.constant 0 : index
    %100 = vector.load %arg10[%c0_71, %c7, %c0_72] : memref<1x8x512xf32, #tpu.memory_space<vmem>>, vector<1x1x512xf32>
    %101 = vector.shape_cast %100 : vector<1x1x512xf32> to vector<1x512xf32>
    %cst_73 = arith.constant dense<0.000000e+00> : vector<512xf32>
    %102 = vector.multi_reduction <add>, %43, %cst_73 [0] : vector<8x512xf32> to vector<512xf32>
    %103 = vector.shape_cast %102 : vector<512xf32> to vector<1x512xf32>
    %104 = arith.addf %101, %103 : vector<1x512xf32>
    %c0_74 = arith.constant 0 : index
    %c7_75 = arith.constant 7 : index
    %c0_76 = arith.constant 0 : index
    %105 = vector.load %arg10[%c0_74, %c7_75, %c0_76] : memref<1x8x512xf32, #tpu.memory_space<vmem>>, vector<1x1x512xf32>
    %106 = vector.shape_cast %105 : vector<1x1x512xf32> to vector<1x512xf32>
    %107 = vector.shape_cast %104 : vector<1x512xf32> to vector<1x1x512xf32>
    tpu.vector_store %arg10[%c0_74, %c7_75, %c0_76], %107 {strides = array<i32>} : memref<1x8x512xf32, #tpu.memory_space<vmem>>, vector<1x1x512xf32>,
    return
  }
  func.func @transform_0(%arg0: i32, %arg1: i32) -> (i32, i32, i32) {
    %c0_i32 = arith.constant 0 : i32
    %c0_i32_0 = arith.constant 0 : i32
    return %arg0, %arg1, %c0_i32 : i32, i32, i32
  }
  func.func @transform_1(%arg0: i32, %arg1: i32) -> (i32, i32, i32) {
    %c0_i32 = arith.constant 0 : i32
    %c0_i32_0 = arith.constant 0 : i32
    return %arg0, %arg1, %c0_i32 : i32, i32, i32
  }
  func.func @transform_2(%arg0: i32, %arg1: i32) -> (i32, i32, i32) {
    %c0_i32 = arith.constant 0 : i32
    %c0_i32_0 = arith.constant 0 : i32
    return %arg0, %arg1, %c0_i32 : i32, i32, i32
  }
  func.func @transform_3(%arg0: i32, %arg1: i32) -> (i32, i32, i32) {
    %c0_i32 = arith.constant 0 : i32
    %c0_i32_0 = arith.constant 0 : i32
    return %arg0, %arg1, %c0_i32 : i32, i32, i32
  }
  func.func @transform_4(%arg0: i32, %arg1: i32) -> (i32, i32, i32) {
    %c0_i32 = arith.constant 0 : i32
    %c0_i32_0 = arith.constant 0 : i32
    return %arg0, %arg1, %c0_i32 : i32, i32, i32
  }
  func.func @transform_5(%arg0: i32, %arg1: i32) -> (i32, i32, i32) {
    %c0_i32 = arith.constant 0 : i32
    %c0_i32_0 = arith.constant 0 : i32
    return %arg0, %arg1, %c0_i32 : i32, i32, i32
  }
  func.func @transform_6(%arg0: i32, %arg1: i32) -> (i32, i32, i32) {
    %c0_i32 = arith.constant 0 : i32
    %c0_i32_0 = arith.constant 0 : i32
    return %arg0, %arg1, %c0_i32 : i32, i32, i32
  }
  func.func @transform_7(%arg0: i32, %arg1: i32) -> (i32, i32, i32) {
    %c0_i32 = arith.constant 0 : i32
    %c0_i32_0 = arith.constant 0 : i32
    return %arg0, %arg1, %c0_i32 : i32, i32, i32
  }
  func.func @transform_8(%arg0: i32, %arg1: i32) -> (i32, i32, i32) {
    %c0_i32 = arith.constant 0 : i32
    %c0_i32_0 = arith.constant 0 : i32
    %c0_i32_1 = arith.constant 0 : i32
    return %arg0, %c0_i32, %c0_i32_0 : i32, i32, i32
  }
}

</mosaic_0001>

<llo_original>
// kernel: tpu_custom_call.1
$region0: #{tpu_custom_call.1}
  #allocation0 [shape = 'u32[]', space=smem, size = 0x4, offset = 0x4, fixed_abs, tag = 'smem constant byte address 0x4 - core index']
  #allocation1 [shape = 'u32[72,128]{1,0:T(1,128)}', space=vmem, size = 0x9000, scoped, tag = 'internal scratch']
  %s0 = inlined_call_operand.hbm [shape: f32[1,8,512], index: 0, kind: input, shape index: {}]
  %s1 = inlined_call_operand.hbm [shape: f32[1,8,512], index: 1, kind: input, shape index: {}]
  %s2 = inlined_call_operand.hbm [shape: f32[1,8,512], index: 2, kind: input, shape index: {}]
  %s3 = inlined_call_operand.hbm [shape: f32[1,8,512], index: 3, kind: input, shape index: {}]
  %s4 = inlined_call_operand.hbm [shape: f32[1,8,512], index: 4, kind: input, shape index: {}]
  %s5 = inlined_call_operand.hbm [shape: f32[1,8,512], index: 5, kind: input, shape index: {}]
  %s6 = inlined_call_operand.hbm [shape: f32[1,8,512], index: 6, kind: input, shape index: {}]
  %s7 = inlined_call_operand.hbm [shape: f32[1,8,512], index: 7, kind: output, shape index: {0}]
  %s8 = inlined_call_operand.hbm [shape: f32[1,8,512], index: 8, kind: output, shape index: {1}]
  %9 = xla_tuple %s7, %s8
  %s10 = sld [smem:[#allocation0]]
  $region78: #{tpu_custom_call.1} parent=0
    _
  %s12 = ssub.s32 1, %s10
  %s13 = scalar_select 0, %s12, %s10
  $region1: #{tpu_custom_call.1} parent=0
    #allocation2 [shape = 'u8[16384]{0}', space=vmem, size = 0x4000, scoped, tag = 'input window, operand 0, single buffered']
    #allocation3 [shape = 's32[1]{0}', space=sflag, size = 0x4, scoped, tag = 'scoped memory for tpu_custom_call.1']
    #allocation4 [shape = 's32[1]{0}', space=sflag, size = 0x4, scoped, tag = 'scoped memory for tpu_custom_call.1']
    #allocation5 [shape = 'u8[16384]{0}', space=vmem, size = 0x4000, scoped, tag = 'input window, operand 1, single buffered']
    #allocation6 [shape = 's32[1]{0}', space=sflag, size = 0x4, scoped, tag = 'scoped memory for tpu_custom_call.1']
    #allocation7 [shape = 'u8[16384]{0}', space=vmem, size = 0x4000, scoped, tag = 'input window, operand 2, single buffered']
    #allocation8 [shape = 'u8[16384]{0}', space=vmem, size = 0x4000, scoped, tag = 'input window, operand 3, single buffered']
    #allocation9 [shape = 's32[1]{0}', space=sflag, size = 0x4, scoped, tag = 'scoped memory for tpu_custom_call.1']
    #allocation10 [shape = 'u8[16384]{0}', space=vmem, size = 0x4000, scoped, tag = 'input window, operand 4, single buffered']
    #allocation11 [shape = 'u8[16384]{0}', space=vmem, size = 0x4000, scoped, tag = 'input window, operand 5, single buffered']
    #allocation12 [shape = 's32[1]{0}', space=sflag, size = 0x4, scoped, tag = 'scoped memory for tpu_custom_call.1']
    #allocation13 [shape = 'u8[16384]{0}', space=vmem, size = 0x4000, scoped, tag = 'input window, operand 6, single buffered']
    #allocation14 [shape = 'u8[16384]{0}', space=vmem, size = 0x4000, scoped, tag = 'output window, operand 0, single buffered']
    #allocation15 [shape = 'u8[16384]{0}', space=vmem, size = 0x4000, scoped, tag = 'output window, operand 1, single buffered']
    #allocation16 [shape = 's32[1]{0}', space=sflag, size = 0x4, scoped, tag = 'scoped memory for tpu_custom_call.1']
    %14 = vsyncpa [#allocation3], 0
    %15 = vsyncpa [#allocation6], 0
    %16 = vsyncpa [#allocation9], 0
    %17 = vsyncpa [#allocation12], 0
    %18 = vsyncpa [#allocation4], 0
    %19 = vsyncpa [#allocation16], 0
    // Predicated region
    $region2: #{tpu_custom_call.1} parent=1 // pred_check
      _
    $region3: #{tpu_custom_call.1} parent=1 // pred_check_branch
      %21 = sbr.rel (0) target = $region5
    $region4: #{tpu_custom_call.1} parent=1 // pred_region
      %23 = vsyncadd [#allocation3], 0
      %s25 = sshll.u32 %s0, 4
      %s26 = int_to_ptr.hbm [resolvable:$true] %s25
      %s27 = sshll.u32 [#allocation2], 4
      %s28 = int_to_ptr.vmem [resolvable:$true] %s27
      %30 = dma.hbm_to_vmem [thread:$0]  %s26, 512, %s28, [#allocation3]
    $region5: #{tpu_custom_call.1} parent=1 // pred_fallthru
      _
    // Predicated region
    $region6: #{tpu_custom_call.1} parent=1 // pred_check
      _
    $region7: #{tpu_custom_call.1} parent=1 // pred_check_branch
      %32 = sbr.rel (0) target = $region9
    $region8: #{tpu_custom_call.1} parent=1 // pred_region
      %34 = vsyncadd [#allocation6], 0
      %s36 = sshll.u32 %s1, 4
      %s37 = int_to_ptr.hbm [resolvable:$true] %s36
      %s38 = sshll.u32 [#allocation5], 4
      %s39 = int_to_ptr.vmem [resolvable:$true] %s38
      %41 = dma.hbm_to_vmem [thread:$0]  %s37, 512, %s39, [#allocation6]
    $region9: #{tpu_custom_call.1} parent=1 // pred_fallthru
      _
    // Predicated region
    $region10: #{tpu_custom_call.1} parent=1 // pred_check
      _
    $region11: #{tpu_custom_call.1} parent=1 // pred_check_branch
      %43 = sbr.rel (0) target = $region13
    $region12: #{tpu_custom_call.1} parent=1 // pred_region
      %45 = vsyncadd [#allocation6], 0
      %s47 = sshll.u32 %s2, 4
      %s48 = int_to_ptr.hbm [resolvable:$true] %s47
      %s49 = sshll.u32 [#allocation7], 4
      %s50 = int_to_ptr.vmem [resolvable:$true] %s49
      %52 = dma.hbm_to_vmem [thread:$0]  %s48, 512, %s50, [#allocation6]
    $region13: #{tpu_custom_call.1} parent=1 // pred_fallthru
      _
    // Predicated region
    $region14: #{tpu_custom_call.1} parent=1 // pred_check
      _
    $region15: #{tpu_custom_call.1} parent=1 // pred_check_branch
      %54 = sbr.rel (0) target = $region17
    $region16: #{tpu_custom_call.1} parent=1 // pred_region
      %56 = vsyncadd [#allocation9], 0
      %s58 = sshll.u32 %s3, 4
      %s59 = int_to_ptr.hbm [resolvable:$true] %s58
      %s60 = sshll.u32 [#allocation8], 4
      %s61 = int_to_ptr.vmem [resolvable:$true] %s60
      %63 = dma.hbm_to_vmem [thread:$0]  %s59, 512, %s61, [#allocation9]
    $region17: #{tpu_custom_call.1} parent=1 // pred_fallthru
      _
    // Predicated region
    $region18: #{tpu_custom_call.1} parent=1 // pred_check
      _
    $region19: #{tpu_custom_call.1} parent=1 // pred_check_branch
      %65 = sbr.rel (0) target = $region21
    $region20: #{tpu_custom_call.1} parent=1 // pred_region
      %67 = vsyncadd [#allocation9], 0
      %s69 = sshll.u32 %s4, 4
      %s70 = int_to_ptr.hbm [resolvable:$true] %s69
      %s71 = sshll.u32 [#allocation10], 4
      %s72 = int_to_ptr.vmem [resolvable:$true] %s71
      %74 = dma.hbm_to_vmem [thread:$0]  %s70, 512, %s72, [#allocation9]
    $region21: #{tpu_custom_call.1} parent=1 // pred_fallthru
      _
    // Predicated region
    $region22: #{tpu_custom_call.1} parent=1 // pred_check
      _
    $region23: #{tpu_custom_call.1} parent=1 // pred_check_branch
      %76 = sbr.rel (0) target = $region25
    $region24: #{tpu_custom_call.1} parent=1 // pred_region
      %78 = vsyncadd [#allocation12], 0
      %s80 = sshll.u32 %s5, 4
      %s81 = int_to_ptr.hbm [resolvable:$true] %s80
      %s82 = sshll.u32 [#allocation11], 4
      %s83 = int_to_ptr.vmem [resolvable:$true] %s82
      %85 = dma.hbm_to_vmem [thread:$0]  %s81, 512, %s83, [#allocation12]
    $region25: #{tpu_custom_call.1} parent=1 // pred_fallthru
      _
    // Predicated region
    $region26: #{tpu_custom_call.1} parent=1 // pred_check
      _
    $region27: #{tpu_custom_call.1} parent=1 // pred_check_branch
      %87 = sbr.rel (0) target = $region29
    $region28: #{tpu_custom_call.1} parent=1 // pred_region
      %89 = vsyncadd [#allocation12], 0
      %s91 = sshll.u32 %s6, 4
      %s92 = int_to_ptr.hbm [resolvable:$true] %s91
      %s93 = sshll.u32 [#allocation13], 4
      %s94 = int_to_ptr.vmem [resolvable:$true] %s93
      %96 = dma.hbm_to_vmem [thread:$0]  %s92, 512, %s94, [#allocation12]
    $region29: #{tpu_custom_call.1} parent=1 // pred_fallthru
      _
    // Predicated region
    $region30: #{tpu_custom_call.1} parent=1 // pred_check
      _
    $region31: #{tpu_custom_call.1} parent=1 // pred_check_branch
      %98 = sbr.rel (0) target = $region33
    $region32: #{tpu_custom_call.1} parent=1 // pred_region
      %100 = dma.done [#allocation3], 512
    $region33: #{tpu_custom_call.1} parent=1 // pred_fallthru
      _
    // Predicated region
    $region34: #{tpu_custom_call.1} parent=1 // pred_check
      _
    $region35: #{tpu_custom_call.1} parent=1 // pred_check_branch
      %102 = sbr.rel (0) target = $region37
    $region36: #{tpu_custom_call.1} parent=1 // pred_region
      %104 = dma.done [#allocation6], 512
    $region37: #{tpu_custom_call.1} parent=1 // pred_fallthru
      _
    // Predicated region
    $region38: #{tpu_custom_call.1} parent=1 // pred_check
      _
    $region39: #{tpu_custom_call.1} parent=1 // pred_check_branch
      %106 = sbr.rel (0) target = $region41
    $region40: #{tpu_custom_call.1} parent=1 // pred_region
      %108 = dma.done [#allocation6], 512
    $region41: #{tpu_custom_call.1} parent=1 // pred_fallthru
      _
    // Predicated region
    $region42: #{tpu_custom_call.1} parent=1 // pred_check
      _
    $region43: #{tpu_custom_call.1} parent=1 // pred_check_branch
      %110 = sbr.rel (0) target = $region45
    $region44: #{tpu_custom_call.1} parent=1 // pred_region
      %112 = dma.done [#allocation9], 512
    $region45: #{tpu_custom_call.1} parent=1 // pred_fallthru
      _
    // Predicated region
    $region46: #{tpu_custom_call.1} parent=1 // pred_check
      _
    $region47: #{tpu_custom_call.1} parent=1 // pred_check_branch
      %114 = sbr.rel (0) target = $region49
    $region48: #{tpu_custom_call.1} parent=1 // pred_region
      %116 = dma.done [#allocation9], 512
    $region49: #{tpu_custom_call.1} parent=1 // pred_fallthru
      _
    // Predicated region
    $region50: #{tpu_custom_call.1} parent=1 // pred_check
      _
    $region51: #{tpu_custom_call.1} parent=1 // pred_check_branch
      %118 = sbr.rel (0) target = $region53
    $region52: #{tpu_custom_call.1} parent=1 // pred_region
      %120 = dma.done [#allocation12], 512
    $region53: #{tpu_custom_call.1} parent=1 // pred_fallthru
      _
    // Predicated region
    $region54: #{tpu_custom_call.1} parent=1 // pred_check
      _
    $region55: #{tpu_custom_call.1} parent=1 // pred_check_branch
      %122 = sbr.rel (0) target = $region57
    $region56: #{tpu_custom_call.1} parent=1 // pred_region
      %124 = dma.done [#allocation12], 512
    $region57: #{tpu_custom_call.1} parent=1 // pred_fallthru
      _
    %p125 = scmp.eq.s32.totalorder 0, 0
    // Predicated region
    $region58: #{tpu_custom_call.1} parent=1 // pred_check
      %p126 = pneg %p125
    $region59: #{tpu_custom_call.1} parent=1 // pred_check_branch
      %128 = sbr.rel (%p126) target = $region61
    $region60: #{tpu_custom_call.1} parent=1 // pred_region
      %129 = vst [vmem:[#allocation15] sm:$0xff] 0.0
      %130 = vst [vmem:[#allocation15 + $0x8] sm:$0xff] 0.0
      %131 = vst [vmem:[#allocation15 + $0x10] sm:$0xff] 0.0
      %132 = vst [vmem:[#allocation15 + $0x18] sm:$0xff] 0.0
    $region61: #{tpu_custom_call.1} parent=1 // pred_fallthru
      _
    %v133 = vld [vmem:[#allocation2] sm:$0xff]
    %v134 = vld [vmem:[#allocation2 + $0x8] sm:$0xff]
    %v135 = vld [vmem:[#allocation2 + $0x10] sm:$0xff]
    %v136 = vld [vmem:[#allocation2 + $0x18] sm:$0xff]
    %v137 = vld [vmem:[#allocation8] sm:$0xff]
    %v138 = vld [vmem:[#allocation8 + $0x8] sm:$0xff]
    %v139 = vld [vmem:[#allocation8 + $0x10] sm:$0xff]
    %v140 = vld [vmem:[#allocation8 + $0x18] sm:$0xff]
    %v141 = vld [vmem:[#allocation10] sm:$0xff]
    %v142 = vld [vmem:[#allocation10 + $0x8] sm:$0xff]
    %v143 = vld [vmem:[#allocation10 + $0x10] sm:$0xff]
    %v144 = vld [vmem:[#allocation10 + $0x18] sm:$0xff]
    %v145 = vld [vmem:[#allocation13] sm:$0xff]
    %v146 = vld [vmem:[#allocation13 + $0x8] sm:$0xff]
    %v147 = vld [vmem:[#allocation13 + $0x10] sm:$0xff]
    %v148 = vld [vmem:[#allocation13 + $0x18] sm:$0xff]
    %v149 = vmul.f32 %v137, %v141
    %v150 = vmul.f32 %v138, %v142
    %v151 = vmul.f32 %v139, %v143
    %v152 = vmul.f32 %v140, %v144
    %v153 = vsub.f32 %v141, %v149
    %v154 = vsub.f32 %v142, %v150
    %v155 = vsub.f32 %v143, %v151
    %v156 = vsub.f32 %v144, %v152
    %v157 = vlog2.pop %v133
    %v158 = vmul.f32 %v157, 0.6931472
    %v159 = vlog2.pop %v134
    %v160 = vmul.f32 %v159, 0.6931472
    %v161 = vlog2.pop %v135
    %v162 = vmul.f32 %v161, 0.6931472
    %v163 = vlog2.pop %v136
    %v164 = vmul.f32 %v163, 0.6931472
    %v165 = vmax.f32 %v158, -100.0
    %v166 = vmax.f32 %v160, -100.0
    %v167 = vmax.f32 %v162, -100.0
    %v168 = vmax.f32 %v164, -100.0
    %v169 = vsub.f32 1.0, %v133
    %v170 = vsub.f32 1.0, %v134
    %v171 = vsub.f32 1.0, %v135
    %v172 = vsub.f32 1.0, %v136
    %v173 = vlog2.pop %v169
    %v174 = vmul.f32 %v173, 0.6931472
    %v175 = vlog2.pop %v170
    %v176 = vmul.f32 %v175, 0.6931472
    %v177 = vlog2.pop %v171
    %v178 = vmul.f32 %v177, 0.6931472
    %v179 = vlog2.pop %v172
    %v180 = vmul.f32 %v179, 0.6931472
    %v181 = vmax.f32 %v174, -100.0
    %v182 = vmax.f32 %v176, -100.0
    %v183 = vmax.f32 %v178, -100.0
    %v184 = vmax.f32 %v180, -100.0
    %v185 = vmul.f32 %v137, %v165
    %v186 = vmul.f32 %v138, %v166
    %v187 = vmul.f32 %v139, %v167
    %v188 = vmul.f32 %v140, %v168
    %v189 = vsub.f32 1.0, %v137
    %v190 = vsub.f32 1.0, %v138
    %v191 = vsub.f32 1.0, %v139
    %v192 = vsub.f32 1.0, %v140
    %v193 = vmul.f32 %v189, %v181
    %v194 = vmul.f32 %v190, %v182
    %v195 = vmul.f32 %v191, %v183
    %v196 = vmul.f32 %v192, %v184
    %v197 = vadd.f32 %v185, %v193
    %v198 = vadd.f32 %v186, %v194
    %v199 = vadd.f32 %v187, %v195
    %v200 = vadd.f32 %v188, %v196
    %v201 = vsub.f32 0.0, %v197
    %v202 = vsub.f32 0.0, %v198
    %v203 = vsub.f32 0.0, %v199
    %v204 = vsub.f32 0.0, %v200
    %v205 = vmul.f32 %v201, %v149
    %v206 = vmul.f32 %v202, %v150
    %v207 = vmul.f32 %v203, %v151
    %v208 = vmul.f32 %v204, %v152
    %v209 = vmul.f32 %v201, %v153
    %v210 = vmul.f32 %v202, %v154
    %v211 = vmul.f32 %v203, %v155
    %v212 = vmul.f32 %v204, %v156
    %213 = vst [vmem:[#allocation14] sm:$0xff] %v209
    %214 = vst [vmem:[#allocation14 + $0x8] sm:$0xff] %v210
    %215 = vst [vmem:[#allocation14 + $0x10] sm:$0xff] %v211
    %216 = vst [vmem:[#allocation14 + $0x18] sm:$0xff] %v212
    %v217 = vld [vmem:[#allocation5] sm:$0xff]
    %v218 = vld [vmem:[#allocation5 + $0x8] sm:$0xff]
    %v219 = vld [vmem:[#allocation5 + $0x10] sm:$0xff]
    %v220 = vld [vmem:[#allocation5 + $0x18] sm:$0xff]
    %v221 = vld [vmem:[#allocation11] sm:$0xff]
    %v222 = vld [vmem:[#allocation11 + $0x8] sm:$0xff]
    %v223 = vld [vmem:[#allocation11 + $0x10] sm:$0xff]
    %v224 = vld [vmem:[#allocation11 + $0x18] sm:$0xff]
    %v225 = vsub.f32 %v217, %v221
    %v226 = vsub.f32 %v218, %v222
    %v227 = vsub.f32 %v219, %v223
    %v228 = vsub.f32 %v220, %v224
    %v229 = vand.u32 2147483647, %v225
    %v230 = vand.u32 2147483647, %v226
    %v231 = vand.u32 2147483647, %v227
    %v232 = vand.u32 2147483647, %v228
    %v233 = vmul.f32 %v229, %v145
    %v234 = vmul.f32 %v230, %v146
    %v235 = vmul.f32 %v231, %v147
    %v236 = vmul.f32 %v232, %v148
    %v237 = vld [vmem:[#allocation7] sm:$0xff]
    %v238 = vld [vmem:[#allocation7 + $0x8] sm:$0xff]
    %v239 = vld [vmem:[#allocation7 + $0x10] sm:$0xff]
    %v240 = vld [vmem:[#allocation7 + $0x18] sm:$0xff]
    %v241 = vmul.f32 %v237, %v149
    %v242 = vmul.f32 %v238, %v150
    %v243 = vmul.f32 %v239, %v151
    %v244 = vmul.f32 %v240, %v152
    %v245 = vmul.f32 %v237, %v141
    %v246 = vmul.f32 %v238, %v142
    %v247 = vmul.f32 %v239, %v143
    %v248 = vmul.f32 %v240, %v144
    %v249 = vld [vmem:[#allocation15] ss:$8 sm:$0xf]
    %v250 = vrot.slane %v149, 4
    %v251 = vadd.f32 %v149, %v250
    %v252 = vrot.slane %v251, 2
    %v253 = vadd.f32 %v251, %v252
    %v254 = vrot.slane %v253, 1
    %v255 = vadd.f32 %v253, %v254
    %v256 = vrot.slane %v150, 4
    %v257 = vadd.f32 %v150, %v256
    %v258 = vrot.slane %v257, 2
    %v259 = vadd.f32 %v257, %v258
    %v260 = vrot.slane %v259, 1
    %v261 = vadd.f32 %v259, %v260
    %v262 = vrot.slane %v151, 4
    %v263 = vadd.f32 %v151, %v262
    %v264 = vrot.slane %v263, 2
    %v265 = vadd.f32 %v263, %v264
    %v266 = vrot.slane %v265, 1
    %v267 = vadd.f32 %v265, %v266
    %v268 = vrot.slane %v152, 4
    %v269 = vadd.f32 %v152, %v268
    %v270 = vrot.slane %v269, 2
    %v271 = vadd.f32 %v269, %v270
    %v272 = vrot.slane %v271, 1
    %v273 = vadd.f32 %v271, %v272
    %v278 = vrot.slane %v261, 7
    %v279 = vrot.slane %v267, 6
    %v280 = vrot.slane %v273, 5
    %vm281 = vcmask 1040384
    %v282 = vsel %vm281, %v255, %v278
    %vm283 = vcmask 1042434
    %v284 = vsel %vm283, %v279, %v280
    %vm285 = vcmask 1041408
    %v286 = vsel %vm285, %v282, %v284
    %v288 = vadd.f32 %v249, %v286
    %v289 = vlaneseq
    %vm290 = vcmp.ge.s32.totalorder %v289, 0
    %vm291 = vcmp.lt.s32.totalorder %v289, 512
    %vm292 = vmand %vm290, %vm291
    %293 = vst.msk [vmem:[#allocation15] ss:$8 sm:$0xf] %vm292, %v288
    %294 = vst.msk [vmem:[#allocation15] ss:$8 sm:$0x0] %vm292, %v288
    %s295 = scalar_lea.vmem [#allocation15], 1
    %v296 = vld [vmem:[%s295] ss:$8 sm:$0xf]
    %v297 = vrot.slane %v153, 4
    %v298 = vadd.f32 %v153, %v297
    %v299 = vrot.slane %v298, 2
    %v300 = vadd.f32 %v298, %v299
    %v301 = vrot.slane %v300, 1
    %v302 = vadd.f32 %v300, %v301
    %v303 = vrot.slane %v154, 4
    %v304 = vadd.f32 %v154, %v303
    %v305 = vrot.slane %v304, 2
    %v306 = vadd.f32 %v304, %v305
    %v307 = vrot.slane %v306, 1
    %v308 = vadd.f32 %v306, %v307
    %v309 = vrot.slane %v155, 4
    %v310 = vadd.f32 %v155, %v309
    %v311 = vrot.slane %v310, 2
    %v312 = vadd.f32 %v310, %v311
    %v313 = vrot.slane %v312, 1
    %v314 = vadd.f32 %v312, %v313
    %v315 = vrot.slane %v156, 4
    %v316 = vadd.f32 %v156, %v315
    %v317 = vrot.slane %v316, 2
    %v318 = vadd.f32 %v316, %v317
    %v319 = vrot.slane %v318, 1
    %v320 = vadd.f32 %v318, %v319
    %v325 = vrot.slane %v308, 7
    %v326 = vrot.slane %v314, 6
    %v327 = vrot.slane %v320, 5
    %v328 = vsel %vm281, %v302, %v325
    %v329 = vsel %vm283, %v326, %v327
    %v330 = vsel %vm285, %v328, %v329
    %v332 = vadd.f32 %v296, %v330
    %333 = vst.msk [vmem:[%s295] ss:$8 sm:$0xf] %vm292, %v332
    %334 = vst.msk [vmem:[%s295] ss:$8 sm:$0x0] %vm292, %v332
    %s335 = scalar_lea.vmem [#allocation15], 2
    %v336 = vld [vmem:[%s335] ss:$8 sm:$0xf]
    %v337 = vrot.slane %v205, 4
    %v338 = vadd.f32 %v205, %v337
    %v339 = vrot.slane %v338, 2
    %v340 = vadd.f32 %v338, %v339
    %v341 = vrot.slane %v340, 1
    %v342 = vadd.f32 %v340, %v341
    %v343 = vrot.slane %v206, 4
    %v344 = vadd.f32 %v206, %v343
    %v345 = vrot.slane %v344, 2
    %v346 = vadd.f32 %v344, %v345
    %v347 = vrot.slane %v346, 1
    %v348 = vadd.f32 %v346, %v347
    %v349 = vrot.slane %v207, 4
    %v350 = vadd.f32 %v207, %v349
    %v351 = vrot.slane %v350, 2
    %v352 = vadd.f32 %v350, %v351
    %v353 = vrot.slane %v352, 1
    %v354 = vadd.f32 %v352, %v353
    %v355 = vrot.slane %v208, 4
    %v356 = vadd.f32 %v208, %v355
    %v357 = vrot.slane %v356, 2
    %v358 = vadd.f32 %v356, %v357
    %v359 = vrot.slane %v358, 1
    %v360 = vadd.f32 %v358, %v359
    %v365 = vrot.slane %v348, 7
    %v366 = vrot.slane %v354, 6
    %v367 = vrot.slane %v360, 5
    %v368 = vsel %vm281, %v342, %v365
    %v369 = vsel %vm283, %v366, %v367
    %v370 = vsel %vm285, %v368, %v369
    %v372 = vadd.f32 %v336, %v370
    %373 = vst.msk [vmem:[%s335] ss:$8 sm:$0xf] %vm292, %v372
    %374 = vst.msk [vmem:[%s335] ss:$8 sm:$0x0] %vm292, %v372
    %s375 = scalar_lea.vmem [#allocation15], 3
    %v376 = vld [vmem:[%s375] ss:$8 sm:$0xf]
    %v377 = vrot.slane %v209, 4
    %v378 = vadd.f32 %v209, %v377
    %v379 = vrot.slane %v378, 2
    %v380 = vadd.f32 %v378, %v379
    %v381 = vrot.slane %v380, 1
    %v382 = vadd.f32 %v380, %v381
    %v383 = vrot.slane %v210, 4
    %v384 = vadd.f32 %v210, %v383
    %v385 = vrot.slane %v384, 2
    %v386 = vadd.f32 %v384, %v385
    %v387 = vrot.slane %v386, 1
    %v388 = vadd.f32 %v386, %v387
    %v389 = vrot.slane %v211, 4
    %v390 = vadd.f32 %v211, %v389
    %v391 = vrot.slane %v390, 2
    %v392 = vadd.f32 %v390, %v391
    %v393 = vrot.slane %v392, 1
    %v394 = vadd.f32 %v392, %v393
    %v395 = vrot.slane %v212, 4
    %v396 = vadd.f32 %v212, %v395
    %v397 = vrot.slane %v396, 2
    %v398 = vadd.f32 %v396, %v397
    %v399 = vrot.slane %v398, 1
    %v400 = vadd.f32 %v398, %v399
    %v405 = vrot.slane %v388, 7
    %v406 = vrot.slane %v394, 6
    %v407 = vrot.slane %v400, 5
    %v408 = vsel %vm281, %v382, %v405
    %v409 = vsel %vm283, %v406, %v407
    %v410 = vsel %vm285, %v408, %v409
    %v412 = vadd.f32 %v376, %v410
    %413 = vst.msk [vmem:[%s375] ss:$8 sm:$0xf] %vm292, %v412
    %414 = vst.msk [vmem:[%s375] ss:$8 sm:$0x0] %vm292, %v412
    %s415 = scalar_lea.vmem [#allocation15], 4
    %v416 = vld [vmem:[%s415] ss:$8 sm:$0xf]
    %v417 = vrot.slane %v233, 4
    %v418 = vadd.f32 %v233, %v417
    %v419 = vrot.slane %v418, 2
    %v420 = vadd.f32 %v418, %v419
    %v421 = vrot.slane %v420, 1
    %v422 = vadd.f32 %v420, %v421
    %v423 = vrot.slane %v234, 4
    %v424 = vadd.f32 %v234, %v423
    %v425 = vrot.slane %v424, 2
    %v426 = vadd.f32 %v424, %v425
    %v427 = vrot.slane %v426, 1
    %v428 = vadd.f32 %v426, %v427
    %v429 = vrot.slane %v235, 4
    %v430 = vadd.f32 %v235, %v429
    %v431 = vrot.slane %v430, 2
    %v432 = vadd.f32 %v430, %v431
    %v433 = vrot.slane %v432, 1
    %v434 = vadd.f32 %v432, %v433
    %v435 = vrot.slane %v236, 4
    %v436 = vadd.f32 %v236, %v435
    %v437 = vrot.slane %v436, 2
    %v438 = vadd.f32 %v436, %v437
    %v439 = vrot.slane %v438, 1
    %v440 = vadd.f32 %v438, %v439
    %v445 = vrot.slane %v428, 7
    %v446 = vrot.slane %v434, 6
    %v447 = vrot.slane %v440, 5
    %v448 = vsel %vm281, %v422, %v445
    %v449 = vsel %vm283, %v446, %v447
    %v450 = vsel %vm285, %v448, %v449
    %v452 = vadd.f32 %v416, %v450
    %453 = vst.msk [vmem:[%s415] ss:$8 sm:$0xf] %vm292, %v452
    %454 = vst.msk [vmem:[%s415] ss:$8 sm:$0x0] %vm292, %v452
    %s455 = scalar_lea.vmem [#allocation15], 5
    %v456 = vld [vmem:[%s455] ss:$8 sm:$0xf]
    %v457 = vrot.slane %v145, 4
    %v458 = vadd.f32 %v145, %v457
    %v459 = vrot.slane %v458, 2
    %v460 = vadd.f32 %v458, %v459
    %v461 = vrot.slane %v460, 1
    %v462 = vadd.f32 %v460, %v461
    %v463 = vrot.slane %v146, 4
    %v464 = vadd.f32 %v146, %v463
    %v465 = vrot.slane %v464, 2
    %v466 = vadd.f32 %v464, %v465
    %v467 = vrot.slane %v466, 1
    %v468 = vadd.f32 %v466, %v467
    %v469 = vrot.slane %v147, 4
    %v470 = vadd.f32 %v147, %v469
    %v471 = vrot.slane %v470, 2
    %v472 = vadd.f32 %v470, %v471
    %v473 = vrot.slane %v472, 1
    %v474 = vadd.f32 %v472, %v473
    %v475 = vrot.slane %v148, 4
    %v476 = vadd.f32 %v148, %v475
    %v477 = vrot.slane %v476, 2
    %v478 = vadd.f32 %v476, %v477
    %v479 = vrot.slane %v478, 1
    %v480 = vadd.f32 %v478, %v479
    %v485 = vrot.slane %v468, 7
    %v486 = vrot.slane %v474, 6
    %v487 = vrot.slane %v480, 5
    %v488 = vsel %vm281, %v462, %v485
    %v489 = vsel %vm283, %v486, %v487
    %v490 = vsel %vm285, %v488, %v489
    %v492 = vadd.f32 %v456, %v490
    %493 = vst.msk [vmem:[%s455] ss:$8 sm:$0xf] %vm292, %v492
    %494 = vst.msk [vmem:[%s455] ss:$8 sm:$0x0] %vm292, %v492
    %s495 = scalar_lea.vmem [#allocation15], 6
    %v496 = vld [vmem:[%s495] ss:$8 sm:$0xf]
    %v497 = vrot.slane %v241, 4
    %v498 = vadd.f32 %v241, %v497
    %v499 = vrot.slane %v498, 2
    %v500 = vadd.f32 %v498, %v499
    %v501 = vrot.slane %v500, 1
    %v502 = vadd.f32 %v500, %v501
    %v503 = vrot.slane %v242, 4
    %v504 = vadd.f32 %v242, %v503
    %v505 = vrot.slane %v504, 2
    %v506 = vadd.f32 %v504, %v505
    %v507 = vrot.slane %v506, 1
    %v508 = vadd.f32 %v506, %v507
    %v509 = vrot.slane %v243, 4
    %v510 = vadd.f32 %v243, %v509
    %v511 = vrot.slane %v510, 2
    %v512 = vadd.f32 %v510, %v511
    %v513 = vrot.slane %v512, 1
    %v514 = vadd.f32 %v512, %v513
    %v515 = vrot.slane %v244, 4
    %v516 = vadd.f32 %v244, %v515
    %v517 = vrot.slane %v516, 2
    %v518 = vadd.f32 %v516, %v517
    %v519 = vrot.slane %v518, 1
    %v520 = vadd.f32 %v518, %v519
    %v525 = vrot.slane %v508, 7
    %v526 = vrot.slane %v514, 6
    %v527 = vrot.slane %v520, 5
    %v528 = vsel %vm281, %v502, %v525
    %v529 = vsel %vm283, %v526, %v527
    %v530 = vsel %vm285, %v528, %v529
    %v532 = vadd.f32 %v496, %v530
    %533 = vst.msk [vmem:[%s495] ss:$8 sm:$0xf] %vm292, %v532
    %534 = vst.msk [vmem:[%s495] ss:$8 sm:$0x0] %vm292, %v532
    %s535 = scalar_lea.vmem [#allocation15], 7
    %v536 = vld [vmem:[%s535] ss:$8 sm:$0xf]
    %v537 = vrot.slane %v245, 4
    %v538 = vadd.f32 %v245, %v537
    %v539 = vrot.slane %v538, 2
    %v540 = vadd.f32 %v538, %v539
    %v541 = vrot.slane %v540, 1
    %v542 = vadd.f32 %v540, %v541
    %v543 = vrot.slane %v246, 4
    %v544 = vadd.f32 %v246, %v543
    %v545 = vrot.slane %v544, 2
    %v546 = vadd.f32 %v544, %v545
    %v547 = vrot.slane %v546, 1
    %v548 = vadd.f32 %v546, %v547
    %v549 = vrot.slane %v247, 4
    %v550 = vadd.f32 %v247, %v549
    %v551 = vrot.slane %v550, 2
    %v552 = vadd.f32 %v550, %v551
    %v553 = vrot.slane %v552, 1
    %v554 = vadd.f32 %v552, %v553
    %v555 = vrot.slane %v248, 4
    %v556 = vadd.f32 %v248, %v555
    %v557 = vrot.slane %v556, 2
    %v558 = vadd.f32 %v556, %v557
    %v559 = vrot.slane %v558, 1
    %v560 = vadd.f32 %v558, %v559
    %v565 = vrot.slane %v548, 7
    %v566 = vrot.slane %v554, 6
    %v567 = vrot.slane %v560, 5
    %v568 = vsel %vm281, %v542, %v565
    %v569 = vsel %vm283, %v566, %v567
    %v570 = vsel %vm285, %v568, %v569
    %v572 = vadd.f32 %v536, %v570
    %573 = vst.msk [vmem:[%s535] ss:$8 sm:$0xf] %vm292, %v572
    %574 = vst.msk [vmem:[%s535] ss:$8 sm:$0x0] %vm292, %v572
    // Predicated region
    $region62: #{tpu_custom_call.1} parent=1 // pred_check
      _
    $region63: #{tpu_custom_call.1} parent=1 // pred_check_branch
      %576 = sbr.rel (0) target = $region65
    $region64: #{tpu_custom_call.1} parent=1 // pred_region
      %578 = vsyncadd [#allocation4], 0
      %s580 = sshll.u32 [#allocation14], 4
      %s581 = int_to_ptr.vmem [resolvable:$true] %s580
      %s582 = sshll.u32 %s7, 4
      %s583 = int_to_ptr.hbm [resolvable:$true] %s582
      %585 = dma.vmem_to_hbm [thread:$0]  %s581, 512, %s583, [#allocation4]
    $region65: #{tpu_custom_call.1} parent=1 // pred_fallthru
      _
    // Predicated region
    $region66: #{tpu_custom_call.1} parent=1 // pred_check
      _
    $region67: #{tpu_custom_call.1} parent=1 // pred_check_branch
      %587 = sbr.rel (0) target = $region69
    $region68: #{tpu_custom_call.1} parent=1 // pred_region
      %589 = vsyncadd [#allocation16], 0
      %s591 = sshll.u32 [#allocation15], 4
      %s592 = int_to_ptr.vmem [resolvable:$true] %s591
      %s593 = sshll.u32 %s8, 4
      %s594 = int_to_ptr.hbm [resolvable:$true] %s593
      %596 = dma.vmem_to_hbm [thread:$0]  %s592, 512, %s594, [#allocation16]
    $region69: #{tpu_custom_call.1} parent=1 // pred_fallthru
      _
    // Predicated region
    $region70: #{tpu_custom_call.1} parent=1 // pred_check
      _
    $region71: #{tpu_custom_call.1} parent=1 // pred_check_branch
      %598 = sbr.rel (0) target = $region73
    $region72: #{tpu_custom_call.1} parent=1 // pred_region
      %600 = dma.done [#allocation4], 512
    $region73: #{tpu_custom_call.1} parent=1 // pred_fallthru
      _
    // Predicated region
    $region74: #{tpu_custom_call.1} parent=1 // pred_check
      _
    $region75: #{tpu_custom_call.1} parent=1 // pred_check_branch
      %602 = sbr.rel (0) target = $region77
    $region76: #{tpu_custom_call.1} parent=1 // pred_region
      %604 = dma.done [#allocation16], 512
    $region77: #{tpu_custom_call.1} parent=1 // pred_fallthru
      _
    %605 = vsyncpa [#allocation3], 1
    %606 = vsyncpa [#allocation6], 1
    %607 = vsyncpa [#allocation9], 1
    %608 = vsyncpa [#allocation12], 1
    %609 = vsyncpa [#allocation4], 1
    %610 = vsyncpa [#allocation16], 1

</llo_original>
